<compile_context>
chip_gen: v7x
topology: tpu7x:2x2x1
jax: 0.10.0
libtpu: 0.0.40
codegen_flags: <defaults>
</compile_context>

<pallas_src>
import jax
import jax.numpy as jnp
from jax.experimental import pallas as pl
from jax.experimental.pallas import tpu as pltpu


# ----------------------------------------------------------------------------
# Fused streaming reduction:  (mean((p-t)^2), mean(|p-t|)) in ONE HBM pass.
# ----------------------------------------------------------------------------
_LANES = 128
_TILE_R_MAX = 4096   # rows/block: 4096*128*4B = 2 MiB per f32 input block.
                     # 2 inputs x 2 pipeline buffers = 8 MiB VMEM; fits scoped
                     # VMEM on v5e/v6e/v7x and keeps v7x ahead of per-step
                     # grid overhead.


def _cdiv(a, b):
    return -(-a // b)


def _geometry(n_elem, itemsize, tile_r_max):
    """Static tiling geometry for the flattened [rows, 128] view."""
    sub = max(8, 32 // itemsize)          # sublane multiple: 8 f32 / 16 bf16 / 32 i8
    rows = _cdiv(n_elem, _LANES)
    rows = _cdiv(rows, sub) * sub         # tiny alignment pad only (< sub*128 elems)
    tile_r = min(tile_r_max, rows)
    assert tile_r % sub == 0, (tile_r, sub)
    n_blocks = _cdiv(rows, tile_r)
    # Megacore (v7x) split: leading "parallel" axis of size 2.  Only enabled when
    # it introduces no phantom block, or the single phantom wastes <= ~11% traffic.
    n_outer = 2 if (n_blocks >= 2 and (n_blocks % 2 == 0 or n_blocks >= 9)) else 1
    inner = _cdiv(n_blocks, n_outer)
    return rows, tile_r, n_blocks, n_outer, inner


def _fused_sq_abs_mean(pred, target, *, tile_r_max=_TILE_R_MAX):
    """One fused Pallas pass: returns (mean((p-t)^2), mean(|p-t|)) as f32 scalars."""
    assert pred.shape == target.shape, (pred.shape, target.shape)
    assert pred.dtype == target.dtype, (pred.dtype, target.dtype)
    n_elem = pred.size
    assert n_elem > 0

    itemsize = jnp.dtype(pred.dtype).itemsize
    rows, tile_r, n_blocks, n_outer, inner = _geometry(n_elem, itemsize, tile_r_max)
    padded = rows * _LANES

    p = jnp.reshape(pred, (-1,))
    t = jnp.reshape(target, (-1,))
    if padded != n_elem:
        # Alignment pad only (< sublane*128 elements); zeros contribute 0 to both sums.
        p = jnp.pad(p, (0, padded - n_elem))
        t = jnp.pad(t, (0, padded - n_elem))
    p2 = jnp.reshape(p, (rows, _LANES))
    t2 = jnp.reshape(t, (rows, _LANES))

    inv_n = 1.0 / float(n_elem)
    # Mask needed only when the grid over-covers `rows` (ragged last block and/or a
    # phantom block from an odd megacore split).  Static decision: zero cost otherwise.
    needs_mask = (n_outer * inner * tile_r) != rows

    def kernel(p_ref, t_ref, sse_ref, sae_ref, sq_acc, ab_acc):
        o = pl.program_id(0)
        i = pl.program_id(1)

        @pl.when(i == 0)
        def _init():
            sq_acc[...] = jnp.zeros_like(sq_acc)
            ab_acc[...] = jnp.zeros_like(ab_acc)

        d = p_ref[...].astype(jnp.float32) - t_ref[...].astype(jnp.float32)
        if needs_mask:
            # Global UNclamped row offset of this block; rows beyond `rows` (ragged
            # tail / phantom block) hold unspecified data and are zeroed here.
            row0 = (o * inner + i) * tile_r
            rid = jax.lax.broadcasted_iota(jnp.int32, (tile_r, _LANES), 0)
            d = jnp.where(row0 + rid < rows, d, 0.0)

        # Per-lane partial sums only: no full-tile accumulator read-modify-write.
        sq_acc[...] += jnp.sum(d * d, axis=0, keepdims=True)
        ab_acc[...] += jnp.sum(jnp.abs(d), axis=0, keepdims=True)

        @pl.when(i == pl.num_programs(1) - 1)
        def _finish():
            sse_ref[...] = (sq_acc[...] * inv_n).reshape(1, 1, _LANES)
            sae_ref[...] = (ab_acc[...] * inv_n).reshape(1, 1, _LANES)

    def in_map(o, i):
        # Clamp so a phantom block never indexes past the array; its contribution
        # is fully masked in the kernel (mask uses the UNclamped index).
        return (jnp.minimum(o * inner + i, n_blocks - 1), 0)

    sse_p, sae_p = pl.pallas_call(
        kernel,
        out_shape=(
            jax.ShapeDtypeStruct((n_outer, 1, _LANES), jnp.float32),
            jax.ShapeDtypeStruct((n_outer, 1, _LANES), jnp.float32),
        ),
        grid=(n_outer, inner),
        in_specs=[
            pl.BlockSpec((tile_r, _LANES), in_map),
            pl.BlockSpec((tile_r, _LANES), in_map),
        ],
        out_specs=(
            pl.BlockSpec((1, 1, _LANES), lambda o, i: (o, 0, 0)),
            pl.BlockSpec((1, 1, _LANES), lambda o, i: (o, 0, 0)),
        ),
        scratch_shapes=[
            pltpu.VMEM((1, _LANES), jnp.float32),
            pltpu.VMEM((1, _LANES), jnp.float32),
        ],
        compiler_params=pltpu.CompilerParams(
            dimension_semantics=("parallel", "arbitrary"),  # outer: megacore, inner: reduction
            vmem_limit_bytes=32 * 1024 * 1024,
        ),
    )(p2, t2)

    # Tiny combine of the (n_outer * 128) per-lane partial means.
    return jnp.sum(sse_p), jnp.sum(sae_p)


# ----------------------------------------------------------------------------
# Module-equivalent classes (reference semantics preserved).
# ----------------------------------------------------------------------------
class Loss:
    """JAX equivalent of the PyTorch `Loss` module (forward is a no-op)."""

    def __init__(self, name):
        self.name = name

    def forward(self, model_output, G):
        pass  # exact reference semantics: returns None (no kernel)

    def __call__(self, *args, **kwargs):
        return self.forward(*args, **kwargs)


class LossCollection(Loss):
    """JAX equivalent of the PyTorch `LossCollection` module (verbatim logic)."""

    def __init__(self, primary_loss=None, other_losses=None):
        super().__init__(name='Collection')
        self.primary_loss = primary_loss
        self.other_losses = other_losses
        self.names = ['loss']
        if self.other_losses is not None:
            for loss in self.other_losses:
                if loss.target_names is not None:
                    loss_names = [target.name + ' ' + loss.name
                                  for target in loss.target_names]
                # TODO(synk): `loss_names` may be unbound when target_names is
                # None — preserved verbatim from the reference module.
                self.names += loss_names

    def forward(self, model_output, G):
        out = {}
        if self.primary_loss is not None:
            assert not self.primary_loss.as_dict
            out['loss'] = self.primary_loss(model_output, G)
        # NOTE: no None-guard on other_losses, exactly as in the reference.
        for loss in self.other_losses:
            out.update(loss(model_output, G))
        return out


# ----------------------------------------------------------------------------
# Example Pallas-backed losses plugged into the collection (demo only).
# Both read from a shared _FusedDiffStats so one collection forward streams
# (model_output, G) through HBM exactly once.
# ----------------------------------------------------------------------------
class _FusedDiffStats:
    """Fused (MSE, MAE) over pred/target, memoized by input identity so every
    loss in a LossCollection forward reuses a single HBM pass (holds in eager
    mode and within a single jit trace)."""

    def __init__(self):
        self._inputs = None
        self._value = None

    def __call__(self, pred, target):
        if (self._inputs is not None
                and pred is self._inputs[0] and target is self._inputs[1]):
            return self._value
        self._value = _fused_sq_abs_mean(pred, target)
        self._inputs = (pred, target)
        return self._value


class _Target:
    def __init__(self, name):
        self.name = name


class PallasMSELoss(Loss):
    """Example primary loss: mean squared error reduced on-TPU with Pallas."""
    as_dict = False
    target_names = None

    def __init__(self, stats=None):
        super().__init__(name='mse')
        self._stats = stats if stats is not None else _FusedDiffStats()

    def forward(self, model_output, G):
        mse, _ = self._stats(model_output, G)
        return mse


class PallasL1Loss(Loss):
    """Example 'other' loss: mean absolute error, returned as a dict."""
    as_dict = True

    def __init__(self, target_names, stats=None):
        super().__init__(name='l1')
        self.target_names = target_names
        self._stats = stats if stats is not None else _FusedDiffStats()

    def forward(self, model_output, G):
        _, mae = self._stats(model_output, G)
        return {t.name + ' ' + self.name: mae for t in self.target_names}


if __name__ == "__main__":
    key = jax.random.PRNGKey(0)
    k1, k2, k3, k4 = jax.random.split(key, 4)

    # --- LossCollection demo (NCHW: batch=2, channels=4, spatial=16x16) -----
    model_output = jax.random.normal(k1, (2, 4, 16, 16), dtype=jnp.float32)
    G = jax.random.normal(k2, (2, 4, 16, 16), dtype=jnp.float32)

    stats = _FusedDiffStats()  # shared -> MSE + L1 from ONE fused Pallas stream
    collection = LossCollection(
        primary_loss=PallasMSELoss(stats=stats),
        other_losses=[PallasL1Loss(target_names=[_Target('G')], stats=stats)],
    )
    assert collection.names == ['loss', 'G l1'], collection.names

    out = collection(model_output, G)
    out = {k: jax.block_until_ready(v) for k, v in out.items()}

    ref_mse = jnp.mean((model_output - G) ** 2)
    ref_l1 = jnp.mean(jnp.abs(model_output - G))
    assert set(out.keys()) == {'loss', 'G l1'}, out.keys()
    assert bool(jnp.allclose(out['loss'], ref_mse, rtol=1e-5, atol=1e-6))
    assert bool(jnp.allclose(out['G l1'], ref_l1, rtol=1e-5, atol=1e-6))

    # Base `Loss.forward` is `pass` in the reference: must return None.
    assert Loss(name='noop')(model_output, G) is None

    # --- Kernel sanity: ragged last block (in-kernel mask path) -------------
    xr = jax.random.normal(k3, (2, 4, 16, 18), dtype=jnp.float32)   # 2304 elems -> 24 rows
    yr = jax.random.normal(k4, (2, 4, 16, 18), dtype=jnp.float32)
    mse_r, mae_r = _fused_sq_abs_mean(xr, yr, tile_r_max=16)        # 2 blocks, ragged tail
    assert bool(jnp.allclose(mse_r, jnp.mean((xr - yr) ** 2), rtol=1e-5, atol=1e-6))
    assert bool(jnp.allclose(mae_r, jnp.mean(jnp.abs(xr - yr)), rtol=1e-5, atol=1e-6))

    # --- Kernel sanity: odd block count -> 2-way split with phantom block ---
    xp = jax.random.normal(k1, (2, 4, 32, 36), dtype=jnp.float32)   # 9216 elems -> 72 rows
    yp = jax.random.normal(k2, (2, 4, 32, 36), dtype=jnp.float32)
    mse_p, mae_p = _fused_sq_abs_mean(xp, yp, tile_r_max=8)         # 9 blocks, grid (2, 5)
    assert bool(jnp.allclose(mse_p, jnp.mean((xp - yp) ** 2), rtol=1e-5, atol=1e-6))
    assert bool(jnp.allclose(mae_p, jnp.mean(jnp.abs(xp - yp)), rtol=1e-5, atol=1e-6))

    jax.block_until_ready((mse_r, mae_r, mse_p, mae_p))
    print("KERNEL_OK")
</pallas_src>

<mosaic_0001>
module attributes {stable_mosaic.version = 11 : i64} {
  func.func @kernel(%arg0: i32, %arg1: i32, %arg2: memref<16x128xf32, #tpu.memory_space<vmem>>, %arg3: memref<16x128xf32, #tpu.memory_space<vmem>>, %arg4: memref<1x1x128xf32, #tpu.memory_space<vmem>>, %arg5: memref<1x1x128xf32, #tpu.memory_space<vmem>>, %arg6: memref<1x128xf32, #tpu.memory_space<vmem>>, %arg7: memref<1x128xf32, #tpu.memory_space<vmem>>) attributes {dimension_semantics = [#tpu.dimension_semantics<parallel>, #tpu.dimension_semantics<arbitrary>], iteration_bounds = array<i64: 1, 1>, scalar_prefetch = 0 : i64, scratch_operands = 2 : i64, tpu.core_type = #tpu.core_type<tc>, window_params = [{transform_indices = @transform_0, window_bounds = array<i64: 16, 128>}, {transform_indices = @transform_1, window_bounds = array<i64: 16, 128>}, {transform_indices = @transform_2, window_bounds = array<i64: 1, 1, 128>}, {transform_indices = @transform_3, window_bounds = array<i64: 1, 1, 128>}]} {
    %c0_i32 = arith.constant 0 : i32
    %0 = arith.cmpi eq, %arg1, %c0_i32 : i32
    %1 = arith.extui %0 : i1 to i32
    %c0_i32_0 = arith.constant 0 : i32
    %2 = arith.cmpi ne, %1, %c0_i32_0 : i32
    scf.if %2 {
      %cst_15 = arith.constant 0.000000e+00 : f32
      %21 = vector.broadcast %cst_15 : f32 to vector<1x128xf32>
      %c0_16 = arith.constant 0 : index
      %c0_17 = arith.constant 0 : index
      %22 = vector.load %arg6[%c0_16, %c0_17] : memref<1x128xf32, #tpu.memory_space<vmem>>, vector<1x128xf32>
      tpu.vector_store %arg6[%c0_16, %c0_17], %21 {strides = array<i32>} : memref<1x128xf32, #tpu.memory_space<vmem>>, vector<1x128xf32>,
      %cst_18 = arith.constant 0.000000e+00 : f32
      %23 = vector.broadcast %cst_18 : f32 to vector<1x128xf32>
      %c0_19 = arith.constant 0 : index
      %c0_20 = arith.constant 0 : index
      %24 = vector.load %arg7[%c0_19, %c0_20] : memref<1x128xf32, #tpu.memory_space<vmem>>, vector<1x128xf32>
      tpu.vector_store %arg7[%c0_19, %c0_20], %23 {strides = array<i32>} : memref<1x128xf32, #tpu.memory_space<vmem>>, vector<1x128xf32>,
    } else {
    }
    %c0 = arith.constant 0 : index
    %c0_1 = arith.constant 0 : index
    %3 = vector.load %arg2[%c0, %c0_1] : memref<16x128xf32, #tpu.memory_space<vmem>>, vector<16x128xf32>
    %c0_2 = arith.constant 0 : index
    %c0_3 = arith.constant 0 : index
    %4 = vector.load %arg3[%c0_2, %c0_3] : memref<16x128xf32, #tpu.memory_space<vmem>>, vector<16x128xf32>
    %5 = arith.subf %3, %4 : vector<16x128xf32>
    %c0_4 = arith.constant 0 : index
    %c0_5 = arith.constant 0 : index
    %6 = vector.load %arg6[%c0_4, %c0_5] : memref<1x128xf32, #tpu.memory_space<vmem>>, vector<1x128xf32>
    %7 = arith.mulf %5, %5 : vector<16x128xf32>
    %cst = arith.constant dense<0.000000e+00> : vector<128xf32>
    %8 = vector.multi_reduction <add>, %7, %cst [0] : vector<16x128xf32> to vector<128xf32>
    %9 = vector.shape_cast %8 : vector<128xf32> to vector<1x128xf32>
    %10 = arith.addf %6, %9 : vector<1x128xf32>
    %c0_6 = arith.constant 0 : index
    %c0_7 = arith.constant 0 : index
    %11 = vector.load %arg6[%c0_6, %c0_7] : memref<1x128xf32, #tpu.memory_space<vmem>>, vector<1x128xf32>
    tpu.vector_store %arg6[%c0_6, %c0_7], %10 {strides = array<i32>} : memref<1x128xf32, #tpu.memory_space<vmem>>, vector<1x128xf32>,
    %c0_8 = arith.constant 0 : index
    %c0_9 = arith.constant 0 : index
    %12 = vector.load %arg7[%c0_8, %c0_9] : memref<1x128xf32, #tpu.memory_space<vmem>>, vector<1x128xf32>
    %13 = math.absf %5 : vector<16x128xf32>
    %cst_10 = arith.constant dense<0.000000e+00> : vector<128xf32>
    %14 = vector.multi_reduction <add>, %13, %cst_10 [0] : vector<16x128xf32> to vector<128xf32>
    %15 = vector.shape_cast %14 : vector<128xf32> to vector<1x128xf32>
    %16 = arith.addf %12, %15 : vector<1x128xf32>
    %c0_11 = arith.constant 0 : index
    %c0_12 = arith.constant 0 : index
    %17 = vector.load %arg7[%c0_11, %c0_12] : memref<1x128xf32, #tpu.memory_space<vmem>>, vector<1x128xf32>
    tpu.vector_store %arg7[%c0_11, %c0_12], %16 {strides = array<i32>} : memref<1x128xf32, #tpu.memory_space<vmem>>, vector<1x128xf32>,
    %c0_i32_13 = arith.constant 0 : i32
    %18 = arith.cmpi eq, %arg1, %c0_i32_13 : i32
    %19 = arith.extui %18 : i1 to i32
    %c0_i32_14 = arith.constant 0 : i32
    %20 = arith.cmpi ne, %19, %c0_i32_14 : i32
    scf.if %20 {
      %c0_15 = arith.constant 0 : index
      %c0_16 = arith.constant 0 : index
      %21 = vector.load %arg6[%c0_15, %c0_16] : memref<1x128xf32, #tpu.memory_space<vmem>>, vector<1x128xf32>
      %cst_17 = arith.constant 4.8828125E-4 : f32
      %22 = vector.broadcast %cst_17 : f32 to vector<1x128xf32>
      %23 = arith.mulf %21, %22 : vector<1x128xf32>
      %24 = vector.shape_cast %23 : vector<1x128xf32> to vector<1x1x128xf32>
      %c0_18 = arith.constant 0 : index
      %c0_19 = arith.constant 0 : index
      %c0_20 = arith.constant 0 : index
      %25 = vector.load %arg4[%c0_18, %c0_19, %c0_20] : memref<1x1x128xf32, #tpu.memory_space<vmem>>, vector<1x1x128xf32>
      tpu.vector_store %arg4[%c0_18, %c0_19, %c0_20], %24 {strides = array<i32>} : memref<1x1x128xf32, #tpu.memory_space<vmem>>, vector<1x1x128xf32>,
      %c0_21 = arith.constant 0 : index
      %c0_22 = arith.constant 0 : index
      %26 = vector.load %arg7[%c0_21, %c0_22] : memref<1x128xf32, #tpu.memory_space<vmem>>, vector<1x128xf32>
      %cst_23 = arith.constant 4.8828125E-4 : f32
      %27 = vector.broadcast %cst_23 : f32 to vector<1x128xf32>
      %28 = arith.mulf %26, %27 : vector<1x128xf32>
      %29 = vector.shape_cast %28 : vector<1x128xf32> to vector<1x1x128xf32>
      %c0_24 = arith.constant 0 : index
      %c0_25 = arith.constant 0 : index
      %c0_26 = arith.constant 0 : index
      %30 = vector.load %arg5[%c0_24, %c0_25, %c0_26] : memref<1x1x128xf32, #tpu.memory_space<vmem>>, vector<1x1x128xf32>
      tpu.vector_store %arg5[%c0_24, %c0_25, %c0_26], %29 {strides = array<i32>} : memref<1x1x128xf32, #tpu.memory_space<vmem>>, vector<1x1x128xf32>,
    } else {
    }
    return
  }
  func.func @transform_0(%arg0: i32, %arg1: i32) -> (i32, i32) {
    %c1_i32 = arith.constant 1 : i32
    %0 = arith.muli %arg0, %c1_i32 : i32
    %1 = arith.addi %0, %arg1 : i32
    %c0_i32 = arith.constant 0 : i32
    %2 = arith.minsi %1, %c0_i32 : i32
    %c0_i32_0 = arith.constant 0 : i32
    %c0_i32_1 = arith.constant 0 : i32
    return %2, %c0_i32_0 : i32, i32
  }
  func.func @transform_1(%arg0: i32, %arg1: i32) -> (i32, i32) {
    %c1_i32 = arith.constant 1 : i32
    %0 = arith.muli %arg0, %c1_i32 : i32
    %1 = arith.addi %0, %arg1 : i32
    %c0_i32 = arith.constant 0 : i32
    %2 = arith.minsi %1, %c0_i32 : i32
    %c0_i32_0 = arith.constant 0 : i32
    %c0_i32_1 = arith.constant 0 : i32
    return %2, %c0_i32_0 : i32, i32
  }
  func.func @transform_2(%arg0: i32, %arg1: i32) -> (i32, i32, i32) {
    %c0_i32 = arith.constant 0 : i32
    %c0_i32_0 = arith.constant 0 : i32
    %c0_i32_1 = arith.constant 0 : i32
    return %arg0, %c0_i32, %c0_i32_0 : i32, i32, i32
  }
  func.func @transform_3(%arg0: i32, %arg1: i32) -> (i32, i32, i32) {
    %c0_i32 = arith.constant 0 : i32
    %c0_i32_0 = arith.constant 0 : i32
    %c0_i32_1 = arith.constant 0 : i32
    return %arg0, %c0_i32, %c0_i32_0 : i32, i32, i32
  }
}

</mosaic_0001>

<llo_original>
// kernel: tpu_custom_call.1
$region0: #{tpu_custom_call.1}
  #allocation0 [shape = 'u32[]', space=smem, size = 0x4, offset = 0x4, fixed_abs, tag = 'smem constant byte address 0x4 - core index']
  #allocation1 [shape = 'u32[144,128]{1,0:T(1,128)}', space=vmem, size = 0x12000, scoped, tag = 'internal scratch']
  #allocation2 [shape = 'f32[1,128]{1,0:T(1,128)}', space=vmem, size = 0x200, scoped, tag = 'scratch operand']
  #allocation3 [shape = 'f32[1,128]{1,0:T(1,128)}', space=vmem, size = 0x200, scoped, tag = 'scratch operand']
  %s0 = inlined_call_operand.hbm [shape: f32[16,128], index: 0, kind: input, shape index: {}]
  %s1 = inlined_call_operand.hbm [shape: f32[16,128], index: 1, kind: input, shape index: {}]
  %s2 = inlined_call_operand.hbm [shape: f32[1,1,128], index: 2, kind: output, shape index: {0}]
  %s3 = inlined_call_operand.hbm [shape: f32[1,1,128], index: 3, kind: output, shape index: {1}]
  %4 = xla_tuple %s2, %s3
  %s5 = sld [smem:[#allocation0]]
  $region42: #{tpu_custom_call.1} parent=0
    _
  %s7 = ssub.s32 1, %s5
  %s8 = scalar_select 0, %s7, %s5
  $region1: #{tpu_custom_call.1} parent=0
    #allocation4 [shape = 'u8[8192]{0}', space=vmem, size = 0x2000, scoped, tag = 'input window, operand 0, single buffered']
    #allocation5 [shape = 's32[1]{0}', space=sflag, size = 0x4, scoped, tag = 'scoped memory for tpu_custom_call.1']
    #allocation6 [shape = 's32[1]{0}', space=sflag, size = 0x4, scoped, tag = 'scoped memory for tpu_custom_call.1']
    #allocation7 [shape = 'u8[8192]{0}', space=vmem, size = 0x2000, scoped, tag = 'input window, operand 1, single buffered']
    #allocation8 [shape = 's32[1]{0}', space=sflag, size = 0x4, scoped, tag = 'scoped memory for tpu_custom_call.1']
    #allocation9 [shape = 'u8[512]{0}', space=vmem, size = 0x400, scoped, tag = 'output window, operand 0, single buffered']
    #allocation10 [shape = 'u8[512]{0}', space=vmem, size = 0x400, scoped, tag = 'output window, operand 1, single buffered']
    #allocation11 [shape = 's32[1]{0}', space=sflag, size = 0x4, scoped, tag = 'scoped memory for tpu_custom_call.1']
    %9 = vsyncpa [#allocation5], 0
    %10 = vsyncpa [#allocation8], 0
    %11 = vsyncpa [#allocation6], 0
    %12 = vsyncpa [#allocation11], 0
    // Predicated region
    $region2: #{tpu_custom_call.1} parent=1 // pred_check
      _
    $region3: #{tpu_custom_call.1} parent=1 // pred_check_branch
      %14 = sbr.rel (0) target = $region5
    $region4: #{tpu_custom_call.1} parent=1 // pred_region
      %s15 = sadd.s32 0, 0
      %p16 = scmp.lt.s32.totalorder %s15, 0
      %s17 = scalar_select %p16, %s15, 0
      %s18 = smul.u32 2, %s17
      %s20 = ssub.s32 256, 256
      %21 = vsyncadd [#allocation5], %s20
      %s22 = smul.addr %s18, 128
      %s23 = scalar_lea.hbm %s0, %s22
      %s24 = sshll.u32 [#allocation4], 4
      %s25 = int_to_ptr.vmem [resolvable:$true] %s24
      %30 = dma.hbm_to_vmem [thread:$0]  %s23, 256, %s25, [#allocation5], 128, 128, 8
    $region5: #{tpu_custom_call.1} parent=1 // pred_fallthru
      _
    // Predicated region
    $region6: #{tpu_custom_call.1} parent=1 // pred_check
      _
    $region7: #{tpu_custom_call.1} parent=1 // pred_check_branch
      %32 = sbr.rel (0) target = $region9
    $region8: #{tpu_custom_call.1} parent=1 // pred_region
      %s33 = sadd.s32 0, 0
      %p34 = scmp.lt.s32.totalorder %s33, 0
      %s35 = scalar_select %p34, %s33, 0
      %s36 = smul.u32 2, %s35
      %s38 = ssub.s32 256, 256
      %39 = vsyncadd [#allocation8], %s38
      %s40 = smul.addr %s36, 128
      %s41 = scalar_lea.hbm %s1, %s40
      %s42 = sshll.u32 [#allocation7], 4
      %s43 = int_to_ptr.vmem [resolvable:$true] %s42
      %48 = dma.hbm_to_vmem [thread:$0]  %s41, 256, %s43, [#allocation8], 128, 128, 8
    $region9: #{tpu_custom_call.1} parent=1 // pred_fallthru
      _
    // Predicated region
    $region10: #{tpu_custom_call.1} parent=1 // pred_check
      _
    $region11: #{tpu_custom_call.1} parent=1 // pred_check_branch
      %50 = sbr.rel (0) target = $region13
    $region12: #{tpu_custom_call.1} parent=1 // pred_region
      %51 = dma.done [#allocation5], 256
    $region13: #{tpu_custom_call.1} parent=1 // pred_fallthru
      _
    // Predicated region
    $region14: #{tpu_custom_call.1} parent=1 // pred_check
      _
    $region15: #{tpu_custom_call.1} parent=1 // pred_check_branch
      %53 = sbr.rel (0) target = $region17
    $region16: #{tpu_custom_call.1} parent=1 // pred_region
      %54 = dma.done [#allocation8], 256
    $region17: #{tpu_custom_call.1} parent=1 // pred_fallthru
      _
    %s55 = sadd.s32 0, 0
    %p56 = scmp.lt.s32.totalorder %s55, 0
    %s57 = scalar_select %p56, %s55, 0
    %s58 = smul.u32 2, %s57
    %s59 = sadd.s32 0, 0
    %p60 = scmp.lt.s32.totalorder %s59, 0
    %s61 = scalar_select %p60, %s59, 0
    %s62 = smul.u32 2, %s61
    %p63 = scmp.eq.s32.totalorder 0, 0
    // Predicated region
    $region18: #{tpu_custom_call.1} parent=1 // pred_check
      %p64 = pneg %p63
    $region19: #{tpu_custom_call.1} parent=1 // pred_check_branch
      %66 = sbr.rel (%p64) target = $region21
    $region20: #{tpu_custom_call.1} parent=1 // pred_region
      %67 = vst [vmem:[#allocation2] sm:$0x1] 0.0
      %68 = vst [vmem:[#allocation3] sm:$0x1] 0.0
    $region21: #{tpu_custom_call.1} parent=1 // pred_fallthru
      _
    %v69 = vld [vmem:[#allocation4] sm:$0xff]
    %v70 = vld [vmem:[#allocation4 + $0x8] sm:$0xff]
    %v71 = vld [vmem:[#allocation7] sm:$0xff]
    %v72 = vld [vmem:[#allocation7 + $0x8] sm:$0xff]
    %v73 = vsub.f32 %v69, %v71
    %v74 = vsub.f32 %v70, %v72
    %v75 = vld [vmem:[#allocation2] sm:$0x1]
    %v76 = vmul.f32 %v73, %v73
    %v77 = vmul.f32 %v74, %v74
    %v78 = vadd.f32 %v76, %v77
    %v79 = vrot.slane %v78, 4
    %v80 = vadd.f32 %v78, %v79
    %v81 = vrot.slane %v80, 2
    %v82 = vadd.f32 %v80, %v81
    %v83 = vrot.slane %v82, 1
    %v84 = vadd.f32 %v82, %v83
    %v85 = vadd.f32 %v75, %v84
    %86 = vst [vmem:[#allocation2] sm:$0x1] %v85
    %v87 = vld [vmem:[#allocation3] sm:$0x1]
    %v88 = vand.u32 2147483647, %v73
    %v89 = vand.u32 2147483647, %v74
    %v90 = vadd.f32 %v88, %v89
    %v91 = vrot.slane %v90, 4
    %v92 = vadd.f32 %v90, %v91
    %v93 = vrot.slane %v92, 2
    %v94 = vadd.f32 %v92, %v93
    %v95 = vrot.slane %v94, 1
    %v96 = vadd.f32 %v94, %v95
    %v97 = vadd.f32 %v87, %v96
    %98 = vst [vmem:[#allocation3] sm:$0x1] %v97
    // Predicated region
    $region22: #{tpu_custom_call.1} parent=1 // pred_check
      %p99 = pneg %p63
    $region23: #{tpu_custom_call.1} parent=1 // pred_check_branch
      %101 = sbr.rel (%p99) target = $region25
    $region24: #{tpu_custom_call.1} parent=1 // pred_region
      %v102 = vld [vmem:[#allocation2] sm:$0x1]
      %v103 = vmul.f32 %v102, 0.00048828125
      %104 = vst [vmem:[#allocation9] sm:$0x1] %v103
      %v105 = vld [vmem:[#allocation3] sm:$0x1]
      %v106 = vmul.f32 %v105, 0.00048828125
      %107 = vst [vmem:[#allocation10] sm:$0x1] %v106
    $region25: #{tpu_custom_call.1} parent=1 // pred_fallthru
      _
    // Predicated region
    $region26: #{tpu_custom_call.1} parent=1 // pred_check
      _
    $region27: #{tpu_custom_call.1} parent=1 // pred_check_branch
      %109 = sbr.rel (0) target = $region29
    $region28: #{tpu_custom_call.1} parent=1 // pred_region
      %s111 = ssub.s32 16, 16
      %112 = vsyncadd [#allocation6], %s111
      %s114 = sshll.u32 [#allocation9], 4
      %s115 = int_to_ptr.vmem [resolvable:$true] %s114
      %117 = dma.vmem_to_hbm [thread:$0]  %s115, 16, %s2, [#allocation6]
    $region29: #{tpu_custom_call.1} parent=1 // pred_fallthru
      _
    // Predicated region
    $region30: #{tpu_custom_call.1} parent=1 // pred_check
      _
    $region31: #{tpu_custom_call.1} parent=1 // pred_check_branch
      %119 = sbr.rel (0) target = $region33
    $region32: #{tpu_custom_call.1} parent=1 // pred_region
      %s121 = ssub.s32 16, 16
      %122 = vsyncadd [#allocation11], %s121
      %s124 = sshll.u32 [#allocation10], 4
      %s125 = int_to_ptr.vmem [resolvable:$true] %s124
      %127 = dma.vmem_to_hbm [thread:$0]  %s125, 16, %s3, [#allocation11]
    $region33: #{tpu_custom_call.1} parent=1 // pred_fallthru
      _
    // Predicated region
    $region34: #{tpu_custom_call.1} parent=1 // pred_check
      _
    $region35: #{tpu_custom_call.1} parent=1 // pred_check_branch
      %129 = sbr.rel (0) target = $region37
    $region36: #{tpu_custom_call.1} parent=1 // pred_region
      %130 = dma.done [#allocation6], 16
    $region37: #{tpu_custom_call.1} parent=1 // pred_fallthru
      _
    // Predicated region
    $region38: #{tpu_custom_call.1} parent=1 // pred_check
      _
    $region39: #{tpu_custom_call.1} parent=1 // pred_check_branch
      %132 = sbr.rel (0) target = $region41
    $region40: #{tpu_custom_call.1} parent=1 // pred_region
      %133 = dma.done [#allocation11], 16
    $region41: #{tpu_custom_call.1} parent=1 // pred_fallthru
      _
    %134 = vsyncpa [#allocation5], 1
    %135 = vsyncpa [#allocation8], 1
    %136 = vsyncpa [#allocation6], 1
    %137 = vsyncpa [#allocation11], 1

</llo_original>
